<compile_context>
chip_gen: v7x
topology: tpu7x:2x2x1
jax: 0.10.0
libtpu: 0.0.40
codegen_flags: <defaults>
</compile_context>

<pallas_src>
import jax
import jax.numpy as jnp
from jax.experimental import pallas as pl
from jax.experimental.pallas import tpu as pltpu


def _pick_row_tile(bt, cap=512):
    """Largest power-of-two row tile <= cap that divides bt (>=8); else full bt."""
    tm = cap
    while tm >= 8:
        if bt % tm == 0:
            return tm
        tm //= 2
    return bt  # full extent (always legal as a block dim)


# --------- dense path (block-diagonal weight): one lane-dense matmul -------------------

def _dense_kernel(x_ref, w_ref, o_ref):
    # x_ref: (tm, N), w_ref: (N, M), o_ref: (tm, M)
    o_ref[...] = jnp.dot(
        x_ref[...], w_ref[...], preferred_element_type=jnp.float32
    ).astype(o_ref.dtype)


def _dense_matmul(x_flat, w_dense):
    bt, n = x_flat.shape
    _, m = w_dense.shape
    tm = _pick_row_tile(bt)
    return pl.pallas_call(
        _dense_kernel,
        out_shape=jax.ShapeDtypeStruct((bt, m), x_flat.dtype),
        grid_spec=pltpu.PrefetchScalarGridSpec(
            num_scalar_prefetch=0,
            grid=(bt // tm,),
            in_specs=[
                pl.BlockSpec((tm, n), lambda i: (i, 0)),
                # grid-invariant index_map -> weight block stays resident in VMEM
                pl.BlockSpec((n, m), lambda i: (0, 0)),
            ],
            out_specs=pl.BlockSpec((tm, m), lambda i: (i, 0)),
        ),
        compiler_params=pltpu.CompilerParams(
            dimension_semantics=("parallel",)
        ),
    )(x_flat, w_dense)


# --------- grouped path (in_g, out_g multiples of 128): group index folded into specs ---

def _grouped_kernel(x_ref, w_ref, o_ref):
    # x_ref: (tm, in_g), w_ref: (in_g, out_g)  [group dim squeezed], o_ref: (tm, out_g)
    o_ref[...] = jnp.dot(
        x_ref[...], w_ref[...], preferred_element_type=jnp.float32
    ).astype(o_ref.dtype)


def _grouped_matmul(x_flat, weights):
    bt, n = x_flat.shape
    g, in_g, out_g = weights.shape
    m = g * out_g
    tm = _pick_row_tile(bt)
    return pl.pallas_call(
        _grouped_kernel,
        out_shape=jax.ShapeDtypeStruct((bt, m), x_flat.dtype),
        grid_spec=pltpu.PrefetchScalarGridSpec(
            num_scalar_prefetch=0,
            # group-major grid: weight block is invariant across the inner BT axis
            grid=(g, bt // tm),
            in_specs=[
                pl.BlockSpec((tm, in_g), lambda gi, bi: (bi, gi)),
                pl.BlockSpec((pl.Squeezed(), in_g, out_g), lambda gi, bi: (gi, 0, 0)),
            ],
            out_specs=pl.BlockSpec((tm, out_g), lambda gi, bi: (bi, gi)),
        ),
        compiler_params=pltpu.CompilerParams(
            dimension_semantics=("parallel", "parallel")
        ),
    )(x_flat, weights)


# --------- forward -----------------------------------------------------------------------

def _block_diag_weight(weights):
    """[g, in_g, out_g] -> block-diagonal [g*in_g, g*out_g]."""
    g, in_g, out_g = weights.shape
    eye = jnp.eye(g, dtype=weights.dtype)
    w4 = weights[:, :, None, :] * eye[:, None, :, None]   # (g, in_g, g, out_g)
    return w4.reshape(g * in_g, g * out_g)


def group_linear_forward(x, weights, n_groups):
    """x: [T, B, N], weights: [n_groups, N//g, M//g] -> [T, B, M]."""
    T, B, N = x.shape
    g, in_g, out_g = weights.shape
    assert g == n_groups and g * in_g == N
    M = g * out_g
    bt = T * B
    # PyTorch .view(B*T, -1) on a contiguous [T, B, N] tensor flattens T-major,
    # identical to this reshape.
    x_flat = x.reshape(bt, N)
    if in_g % 128 == 0 and out_g % 128 == 0 and bt % 8 == 0:
        y_flat = _grouped_matmul(x_flat, weights)
    else:
        # Tiny groups: one lane-dense matmul against a block-diagonal weight beats
        # g sub-128-lane matmuls (pays only cheap redundant FLOPs on the zero blocks).
        y_flat = _dense_matmul(x_flat, _block_diag_weight(weights))
    # TODO(synk): dropout not implemented; module default drop_p=0.0 -> no-op.
    return y_flat.reshape(T, B, M)


def xavier_uniform(key, shape, dtype=jnp.float32):
    # nn.init.xavier_uniform_ on a 3D [g, in_g, out_g] tensor:
    #   fan_in  = shape[1] * prod(shape[2:]) = in_g * out_g
    #   fan_out = shape[0] * prod(shape[2:]) = g * out_g
    g, in_g, out_g = shape
    fan_in = in_g * out_g
    fan_out = g * out_g
    limit = (6.0 / (fan_in + fan_out)) ** 0.5
    return jax.random.uniform(key, shape, dtype, minval=-limit, maxval=limit)


if __name__ == "__main__":
    def run_check(T, B, in_features, out_features, n_groups, key):
        kx, kw = jax.random.split(key)
        in_g = in_features // n_groups
        out_g = out_features // n_groups
        x = jax.random.normal(kx, (T, B, in_features), dtype=jnp.float32)
        w = xavier_uniform(kw, (n_groups, in_g, out_g), dtype=jnp.float32)
        y = jax.block_until_ready(group_linear_forward(x, w, n_groups))
        # pure-JAX reference (same math as the torch.bmm path)
        xg = x.reshape(T * B, n_groups, in_g).transpose(1, 0, 2)
        y_ref = jnp.einsum(
            "gbi,gio->gbo", xg, w, precision=jax.lax.Precision.HIGHEST
        ).transpose(1, 0, 2).reshape(T, B, out_features)
        assert y.shape == (T, B, out_features)
        assert jnp.allclose(y, y_ref, atol=1e-3, rtol=1e-3), \
            float(jnp.abs(y - y_ref).max())

    k1, k2 = jax.random.split(jax.random.PRNGKey(0))
    # Small demo shapes (in_g = out_g = 8 < 128): block-diagonal single-matmul path.
    run_check(T=8, B=2, in_features=32, out_features=32, n_groups=4, key=k1)
    # 128-aligned groups: grouped path with group selection folded into the index_map.
    run_check(T=8, B=2, in_features=512, out_features=512, n_groups=4, key=k2)

    print("KERNEL_OK")
</pallas_src>

<mosaic_0001>
module attributes {stable_mosaic.version = 11 : i64} {
  func.func @_dense_kernel(%arg0: i32, %arg1: memref<16x32xf32, #tpu.memory_space<vmem>>, %arg2: memref<32x32xf32, #tpu.memory_space<vmem>>, %arg3: memref<16x32xf32, #tpu.memory_space<vmem>>) attributes {dimension_semantics = [#tpu.dimension_semantics<parallel>], iteration_bounds = array<i64: 1>, scalar_prefetch = 0 : i64, scratch_operands = 0 : i64, tpu.core_type = #tpu.core_type<tc>, window_params = [{transform_indices = @transform_0, window_bounds = array<i64: 16, 32>}, {pipeline_mode = #tpu.pipeline_mode<synchronous>, transform_indices = @transform_1, window_bounds = array<i64: 32, 32>}, {transform_indices = @transform_2, window_bounds = array<i64: 16, 32>}]} {
    %c0 = arith.constant 0 : index
    %c0_0 = arith.constant 0 : index
    %0 = vector.load %arg1[%c0, %c0_0] : memref<16x32xf32, #tpu.memory_space<vmem>>, vector<16x32xf32>
    %c0_1 = arith.constant 0 : index
    %c0_2 = arith.constant 0 : index
    %1 = vector.load %arg2[%c0_1, %c0_2] : memref<32x32xf32, #tpu.memory_space<vmem>>, vector<32x32xf32>
    %cst = arith.constant dense<0.000000e+00> : vector<16x32xf32>
    %2 = tpu.matmul %0, %1, %cst {dimension_numbers = #tpu.dot_dimension_numbers<[1], [0], [0], [1], [0, 0, 1, 1], [], []>} : vector<16x32xf32>, vector<32x32xf32>, vector<16x32xf32> -> vector<16x32xf32>
    %c0_3 = arith.constant 0 : index
    %c0_4 = arith.constant 0 : index
    %3 = vector.load %arg3[%c0_3, %c0_4] : memref<16x32xf32, #tpu.memory_space<vmem>>, vector<16x32xf32>
    tpu.vector_store %arg3[%c0_3, %c0_4], %2 {strides = array<i32>} : memref<16x32xf32, #tpu.memory_space<vmem>>, vector<16x32xf32>,
    return
  }
  func.func @transform_0(%arg0: i32) -> (i32, i32) {
    %c0_i32 = arith.constant 0 : i32
    %c0_i32_0 = arith.constant 0 : i32
    return %arg0, %c0_i32 : i32, i32
  }
  func.func @transform_1(%arg0: i32) -> (i32, i32) {
    %c0_i32 = arith.constant 0 : i32
    %c0_i32_0 = arith.constant 0 : i32
    %c0_i32_1 = arith.constant 0 : i32
    return %c0_i32, %c0_i32_0 : i32, i32
  }
  func.func @transform_2(%arg0: i32) -> (i32, i32) {
    %c0_i32 = arith.constant 0 : i32
    %c0_i32_0 = arith.constant 0 : i32
    return %arg0, %c0_i32 : i32, i32
  }
}

</mosaic_0001>

<llo_original>
// kernel: tpu_custom_call.1
$region0: #{tpu_custom_call.1}
  #allocation0 [shape = 'u32[]', space=smem, size = 0x4, offset = 0x4, fixed_abs, tag = 'smem constant byte address 0x4 - core index']
  #allocation1 [shape = 'u32[144,128]{1,0:T(1,128)}', space=vmem, size = 0x12000, scoped, tag = 'internal scratch']
  %s0 = inlined_call_operand.hbm [shape: f32[16,32], index: 0, kind: input, shape index: {}]
  %s1 = inlined_call_operand.hbm [shape: f32[32,32], index: 1, kind: input, shape index: {}]
  %s2 = inlined_call_operand.hbm [shape: f32[16,32], index: 2, kind: output, shape index: {}]
  %s3 = sld [smem:[#allocation0]]
  $region26: #{tpu_custom_call.1} parent=0
    _
  %s5 = ssub.s32 1, %s3
  %s6 = scalar_select 0, %s5, %s3
  $region1: #{tpu_custom_call.1} parent=0
    #allocation2 [shape = 'u8[8192]{0}', space=vmem, size = 0x2000, scoped, tag = 'input window, operand 0, single buffered']
    #allocation3 [shape = 's32[1]{0}', space=sflag, size = 0x4, scoped, tag = 'scoped memory for tpu_custom_call.1']
    #allocation4 [shape = 's32[1]{0}', space=sflag, size = 0x4, scoped, tag = 'scoped memory for tpu_custom_call.1']
    #allocation5 [shape = 'u8[16384]{0}', space=vmem, size = 0x4000, scoped, tag = 'input window, operand 1, single buffered']
    #allocation6 [shape = 's32[1]{0}', space=sflag, size = 0x4, scoped, tag = 'scoped memory for tpu_custom_call.1']
    #allocation7 [shape = 'u8[8192]{0}', space=vmem, size = 0x2000, scoped, tag = 'output window, operand 0, single buffered']
    %7 = vsyncpa [#allocation3], 0
    %8 = vsyncpa [#allocation6], 0
    %9 = vsyncpa [#allocation4], 0
    // Predicated region
    $region2: #{tpu_custom_call.1} parent=1 // pred_check
      _
    $region3: #{tpu_custom_call.1} parent=1 // pred_check_branch
      %11 = sbr.rel (0) target = $region5
    $region4: #{tpu_custom_call.1} parent=1 // pred_region
      %s13 = ssub.s32 256, 256
      %14 = vsyncadd [#allocation3], %s13
      %s15 = sshll.u32 [#allocation2], 4
      %s16 = int_to_ptr.vmem [resolvable:$true] %s15
      %21 = dma.hbm_to_vmem [thread:$0]  %s0, 256, %s16, [#allocation3], 128, 128, 8
    $region5: #{tpu_custom_call.1} parent=1 // pred_fallthru
      _
    // Predicated region
    $region6: #{tpu_custom_call.1} parent=1 // pred_check
      _
    $region7: #{tpu_custom_call.1} parent=1 // pred_check_branch
      %23 = sbr.rel (0) target = $region9
    $region8: #{tpu_custom_call.1} parent=1 // pred_region
      %s25 = ssub.s32 512, 512
      %26 = vsyncadd [#allocation6], %s25
      %s27 = sshll.u32 [#allocation5], 4
      %s28 = int_to_ptr.vmem [resolvable:$true] %s27
      %33 = dma.hbm_to_vmem [thread:$0]  %s1, 512, %s28, [#allocation6], 128, 128, 8
    $region9: #{tpu_custom_call.1} parent=1 // pred_fallthru
      _
    // Predicated region
    $region10: #{tpu_custom_call.1} parent=1 // pred_check
      _
    $region11: #{tpu_custom_call.1} parent=1 // pred_check_branch
      %35 = sbr.rel (0) target = $region13
    $region12: #{tpu_custom_call.1} parent=1 // pred_region
      %36 = dma.done [#allocation3], 256
    $region13: #{tpu_custom_call.1} parent=1 // pred_fallthru
      _
    // Predicated region
    $region14: #{tpu_custom_call.1} parent=1 // pred_check
      _
    $region15: #{tpu_custom_call.1} parent=1 // pred_check_branch
      %38 = sbr.rel (0) target = $region17
    $region16: #{tpu_custom_call.1} parent=1 // pred_region
      %39 = dma.done [#allocation6], 512
    $region17: #{tpu_custom_call.1} parent=1 // pred_fallthru
      _
    %v40 = vld [vmem:[#allocation2] sm:$0xff]
    %v41 = vld [vmem:[#allocation2 + $0x8] sm:$0xff]
    %v42 = vld [vmem:[#allocation5] sm:$0xff]
    %v43 = vld [vmem:[#allocation5 + $0x8] sm:$0xff]
    %v44 = vld [vmem:[#allocation5 + $0x10] sm:$0xff]
    %v45 = vld [vmem:[#allocation5 + $0x18] sm:$0xff]
    %vm46 = vcmask 261120
    %v48 = vsel %vm46, %v40, 0
    %v51 = vsel %vm46, %v41, 0
    %53 = vmatprep.subr.mxu0 0.0
    %54 = vmatpush1.msra.mxu0 %v42
    %55 = vmatprep.subr.mxu0 0.0
    %56 = vmatpush1.msra.mxu0 %v43
    %57 = vmatprep.subr.mxu0 0.0
    %58 = vmatpush1.msra.mxu0 %v44
    %59 = vmatprep.subr.mxu0 0.0
    %60 = vmatpush1.msra.mxu0 %v45
    %61 = vmatprep.subr.mxu0 0.0
    %62 = vmatpush1.msra.mxu0 0.0
    %63 = vmatprep.subr.mxu0 0.0
    %64 = vmatpush1.msra.mxu0 0.0
    %65 = vmatprep.subr.mxu0 0.0
    %66 = vmatpush1.msra.mxu0 0.0
    %67 = vmatprep.subr.mxu0 0.0
    %68 = vmatpush1.msra.mxu0 0.0
    %69 = vmatprep.subr.mxu0 0.0
    %70 = vmatpush1.msra.mxu0 0.0
    %71 = vmatprep.subr.mxu0 0.0
    %72 = vmatpush1.msra.mxu0 0.0
    %73 = vmatprep.subr.mxu0 0.0
    %74 = vmatpush1.msra.mxu0 0.0
    %75 = vmatprep.subr.mxu0 0.0
    %76 = vmatpush1.msra.mxu0 0.0
    %77 = vmatprep.subr.mxu0 0.0
    %78 = vmatpush1.msra.mxu0 0.0
    %79 = vmatprep.subr.mxu0 0.0
    %80 = vmatpush1.msra.mxu0 0.0
    %81 = vmatprep.subr.mxu0 0.0
    %82 = vmatpush1.msra.mxu0 0.0
    %83 = vmatprep.subr.mxu0 0.0
    %84 = vmatpush1.msra.mxu0 0.0
    %85 = vmatprep.subr.mxu0 0.0
    %86 = vmatpush1.msra.mxu0 0.0
    %87 = vmatprep.subr.mxu0 0.0
    %88 = vmatpush1.msra.mxu0 0.0
    %89 = vmatprep.subr.mxu0 0.0
    %90 = vmatpush1.msra.mxu0 0.0
    %91 = vmatprep.subr.mxu0 0.0
    %92 = vmatpush1.msra.mxu0 0.0
    %93 = vmatprep.subr.mxu0 0.0
    %94 = vmatpush1.msra.mxu0 0.0
    %95 = vmatprep.subr.mxu0 0.0
    %96 = vmatpush1.msra.mxu0 0.0
    %97 = vmatprep.subr.mxu0 0.0
    %98 = vmatpush1.msra.mxu0 0.0
    %99 = vmatprep.subr.mxu0 0.0
    %100 = vmatpush1.msra.mxu0 0.0
    %101 = vmatprep.subr.mxu0 0.0
    %102 = vmatpush1.msra.mxu0 0.0
    %103 = vmatprep.subr.mxu0 0.0
    %104 = vmatpush1.msra.mxu0 0.0
    %105 = vmatprep.subr.mxu0 0.0
    %106 = vmatpush1.msra.mxu0 0.0
    %107 = vmatprep.subr.mxu0 0.0
    %108 = vmatpush1.msra.mxu0 0.0
    %109 = vmatprep.subr.mxu0 0.0
    %110 = vmatpush1.msra.mxu0 0.0
    %111 = vmatprep.subr.mxu0 0.0
    %112 = vmatpush1.msra.mxu0 0.0
    %113 = vmatprep.subr.mxu0 0.0
    %114 = vmatpush1.msra.mxu0 0.0
    %115 = vmatprep.subr.mxu0 0.0
    %116 = vmatpush1.msra.mxu0 0.0
    %117 = vmatprep.mubr.f32.mxu0 0.0
    %118 = vmatmul.mubr.f32.gmra.mrb[0].mxu0 %v48
    %v119 = vpop.f32.mrb[0].mxu0
    %v120 = vadd.f32 0.0, %v119
    %v121 = vpop.f32.mrb[0].mxu0
    %122 = vmatprep.mubr.f32.mxu0 0.0
    %123 = vmatmul.mubr.f32.gmra.mrb[0].mxu0 %v51
    %v124 = vpop.f32.mrb[0].mxu0
    %v125 = vadd.f32 0.0, %v124
    %v126 = vpop.f32.mrb[0].mxu0
    %127 = vdwg.mxu0
    %128 = vst.msk [vmem:[#allocation7] sm:$0xff] %vm46, %v120
    %129 = vst.msk [vmem:[#allocation7 + $0x8] sm:$0xff] %vm46, %v125
    // Predicated region
    $region18: #{tpu_custom_call.1} parent=1 // pred_check
      _
    $region19: #{tpu_custom_call.1} parent=1 // pred_check_branch
      %131 = sbr.rel (0) target = $region21
    $region20: #{tpu_custom_call.1} parent=1 // pred_region
      %s133 = ssub.s32 256, 256
      %134 = vsyncadd [#allocation4], %s133
      %s135 = sshll.u32 [#allocation7], 4
      %s136 = int_to_ptr.vmem [resolvable:$true] %s135
      %141 = dma.vmem_to_hbm [thread:$0]  %s136, 256, %s2, [#allocation4], 128, 128, 8
    $region21: #{tpu_custom_call.1} parent=1 // pred_fallthru
      _
    // Predicated region
    $region22: #{tpu_custom_call.1} parent=1 // pred_check
      _
    $region23: #{tpu_custom_call.1} parent=1 // pred_check_branch
      %143 = sbr.rel (0) target = $region25
    $region24: #{tpu_custom_call.1} parent=1 // pred_region
      %144 = dma.done [#allocation4], 256
    $region25: #{tpu_custom_call.1} parent=1 // pred_fallthru
      _
    %145 = vsyncpa [#allocation3], 1
    %146 = vsyncpa [#allocation6], 1
    %147 = vsyncpa [#allocation4], 1

</llo_original>
